<compile_context>
chip_gen: v7x
topology: tpu7x:2x2x1
jax: 0.10.0
libtpu: 0.0.40
codegen_flags: <defaults>
</compile_context>

<pallas_src>
import functools
import math

import jax
import jax.numpy as jnp
from jax import lax
from jax.experimental import pallas as pl
from jax.experimental.pallas import tpu as pltpu


def _pick_tile(dim, candidates):
    """Largest candidate that evenly tiles `dim`; otherwise the full dim."""
    for t in candidates:
        if t <= dim and dim % t == 0:
            return t
    return dim


# ----------------------------------------------------------------------------
# Kernel 1: tiled dense layer  y = x @ W + b
#   grid = (M/tm, N/tn, K/tk); f32 accumulator lives in VMEM scratch and is
#   initialized / finalized with pl.when on the (arbitrary) K axis.
# ----------------------------------------------------------------------------
def _linear_kernel(x_ref, w_ref, b_ref, o_ref, acc_ref):
    @pl.when(pl.program_id(2) == 0)
    def _():
        acc_ref[...] = jnp.zeros_like(acc_ref)

    acc_ref[...] += jnp.dot(x_ref[...], w_ref[...],
                            preferred_element_type=jnp.float32)

    @pl.when(pl.program_id(2) == pl.num_programs(2) - 1)
    def _():
        o_ref[...] = (acc_ref[...] + b_ref[...].astype(jnp.float32)
                      ).astype(o_ref.dtype)


def linear(x, w, b, *, tm=256, tn=256, tk=512):
    """x: (M, K); w: (K, N); b: (N,) -> (M, N)."""
    M, K = x.shape
    _, N = w.shape
    # tm: sublane dim (multiple of 8 or full); tn/tk touch the lane dim
    # (multiple of 128 or full).
    tm = _pick_tile(M, (tm, 128, 64, 32, 16, 8))
    tn = _pick_tile(N, (tn, 128))
    tk = _pick_tile(K, (tk, 256, 128))
    grid = (M // tm, N // tn, K // tk)

    cost = pl.CostEstimate(
        flops=2 * M * N * K,
        transcendentals=0,
        bytes_accessed=(M * K + K * N + N + M * N) * x.dtype.itemsize)

    return pl.pallas_call(
        _linear_kernel,
        out_shape=jax.ShapeDtypeStruct((M, N), x.dtype),
        grid=grid,
        in_specs=[
            pl.BlockSpec((tm, tk), lambda i, j, k: (i, k)),
            pl.BlockSpec((tk, tn), lambda i, j, k: (k, j)),
            pl.BlockSpec((1, tn), lambda i, j, k: (0, j)),
        ],
        out_specs=pl.BlockSpec((tm, tn), lambda i, j, k: (i, j)),
        scratch_shapes=[pltpu.VMEM((tm, tn), jnp.float32)],
        compiler_params=pltpu.CompilerParams(
            dimension_semantics=("parallel", "parallel", "arbitrary")),
        cost_estimate=cost,
    )(x, w, b.reshape(1, N))


# ----------------------------------------------------------------------------
# Kernel 2: flash-style attention core, (B, S, E) in -> (B, S, E) out.
#   grid = (B, Sq/tq, Sk/tkv); online softmax scratch (m, l, acc) persists
#   across the kv (arbitrary) axis. Heads are sliced statically from the E dim
#   inside the kernel, so no (B,H,S,D) transposes ever touch HBM, and the
#   output store is a full-width lane-dense (tq, E) slab.
# ----------------------------------------------------------------------------
def _attn_kernel(q_ref, k_ref, v_ref, o_ref, m_sc, l_sc, acc_sc, *,
                 num_heads, head_dim, inv_scale):
    kv = pl.program_id(2)
    H, D = num_heads, head_dim

    @pl.when(kv == 0)
    def _():
        m_sc[...] = jnp.full_like(m_sc, -jnp.inf)
        l_sc[...] = jnp.zeros_like(l_sc)
        acc_sc[...] = jnp.zeros_like(acc_sc)

    q = q_ref[0]                                   # (tq,  E) input dtype
    k = k_ref[0]                                   # (tkv, E)
    v = v_ref[0]                                   # (tkv, E)
    scale = jnp.asarray(inv_scale, dtype=q.dtype)

    for h in range(H):                             # static unroll over heads
        sl = slice(h * D, (h + 1) * D)
        qh = q[:, sl] * scale                      # fold 1/sqrt(D) into q
        kh = k[:, sl]
        vh = v[:, sl]

        # Contract the head dim of both operands directly (no explicit k.T).
        s = lax.dot_general(qh, kh, (((1,), (1,)), ((), ())),
                            preferred_element_type=jnp.float32)   # (tq, tkv)

        m_prev = m_sc[h]                                          # (tq, 1) f32
        m_new = jnp.maximum(m_prev, jnp.max(s, axis=-1, keepdims=True))
        alpha = jnp.exp(m_prev - m_new)
        p = jnp.exp(s - m_new)                                    # (tq, tkv) f32

        l_sc[h] = alpha * l_sc[h] + jnp.sum(p, axis=-1, keepdims=True)
        acc_sc[h] = alpha * acc_sc[h] + jnp.dot(
            p.astype(vh.dtype), vh, preferred_element_type=jnp.float32)
        m_sc[h] = m_new

    @pl.when(kv == pl.num_programs(2) - 1)
    def _():
        ctx = [acc_sc[h] * pl.reciprocal(l_sc[h], approx=True)
               for h in range(H)]
        o_ref[0] = jnp.concatenate(ctx, axis=-1).astype(o_ref.dtype)


def attention_core(q, k, v, num_heads, *, tq=512, tkv=512):
    """q: (B, Sq, E); k, v: (B, Sk, E) -> (B, Sq, E)."""
    B, Sq, E = q.shape
    Sk = k.shape[1]
    D = E // num_heads
    tq = _pick_tile(Sq, (tq, 256, 128, 64, 32, 16, 8))
    tkv = _pick_tile(Sk, (tkv, 256, 128, 64, 32, 16, 8))
    grid = (B, Sq // tq, Sk // tkv)
    inv_scale = 1.0 / math.sqrt(D)

    cost = pl.CostEstimate(
        flops=4 * B * num_heads * Sq * Sk * D,
        transcendentals=B * num_heads * Sq * Sk,
        bytes_accessed=(2 * B * Sk * E + 2 * B * Sq * E) * q.dtype.itemsize)

    kernel = functools.partial(_attn_kernel, num_heads=num_heads,
                               head_dim=D, inv_scale=inv_scale)
    return pl.pallas_call(
        kernel,
        out_shape=jax.ShapeDtypeStruct((B, Sq, E), q.dtype),
        grid=grid,
        in_specs=[
            pl.BlockSpec((1, tq, E), lambda b, qi, kv: (b, qi, 0)),
            pl.BlockSpec((1, tkv, E), lambda b, qi, kv: (b, kv, 0)),
            pl.BlockSpec((1, tkv, E), lambda b, qi, kv: (b, kv, 0)),
        ],
        out_specs=pl.BlockSpec((1, tq, E), lambda b, qi, kv: (b, qi, 0)),
        scratch_shapes=[
            pltpu.VMEM((num_heads, tq, 1), jnp.float32),   # running max
            pltpu.VMEM((num_heads, tq, 1), jnp.float32),   # running sum
            pltpu.VMEM((num_heads, tq, D), jnp.float32),   # running context
        ],
        compiler_params=pltpu.CompilerParams(
            dimension_semantics=("parallel", "parallel", "arbitrary")),
        cost_estimate=cost,
    )(q, k, v)


# ----------------------------------------------------------------------------
# Module wrapper
# ----------------------------------------------------------------------------
class MultiheadAttentionPallas:
    def __init__(self, emb_size, num_heads, key):
        assert emb_size % num_heads == 0
        self.emb_size = emb_size
        self.num_heads = num_heads
        self.head_dim = emb_size // num_heads

        ks = jax.random.split(key, 8)

        def init_linear(kw, kb):
            # PyTorch Linear stores weight as (out, in); we keep (in, out) so
            # the kernel computes x @ W directly.
            bound = 1.0 / math.sqrt(emb_size)
            w = jax.random.uniform(kw, (emb_size, emb_size), jnp.float32,
                                   -bound, bound)
            b = jax.random.uniform(kb, (emb_size,), jnp.float32, -bound, bound)
            return w, b

        self.wq, self.bq = init_linear(ks[0], ks[1])
        self.wk, self.bk = init_linear(ks[2], ks[3])
        self.wv, self.bv = init_linear(ks[4], ks[5])
        self.wo, self.bo = init_linear(ks[6], ks[7])

        # Pre-fused QKV weights for the self-attention fast path: one HBM read
        # of the activation instead of three, one kernel launch instead of 3.
        self.w_qkv = jnp.concatenate([self.wq, self.wk, self.wv], axis=1)
        self.b_qkv = jnp.concatenate([self.bq, self.bk, self.bv])

    def __call__(self, query, key, value):
        B, Sq, E = query.shape
        Sk = key.shape[1]

        if query is key and key is value:
            # Fused QKV projection (self-attention).
            qkv = linear(query.reshape(B * Sq, E), self.w_qkv, self.b_qkv)
            q, k, v = qkv[:, :E], qkv[:, E:2 * E], qkv[:, 2 * E:]
        else:
            q = linear(query.reshape(B * Sq, E), self.wq, self.bq)
            k = linear(key.reshape(B * Sk, E), self.wk, self.bk)
            v = linear(value.reshape(B * Sk, E), self.wv, self.bv)

        # (B*S, E) -> (B, S, E): contiguous reshape only, no transposes.
        q = q.reshape(B, Sq, E)
        k = k.reshape(B, Sk, E)
        v = v.reshape(B, Sk, E)

        # Flash-style attention; output already (B, Sq, E).
        ctx = attention_core(q, k, v, self.num_heads)

        out = linear(ctx.reshape(B * Sq, E), self.wo, self.bo)
        return out.reshape(B, Sq, E)


# ----------------------------------------------------------------------------
# Pure-JAX reference for correctness check
# ----------------------------------------------------------------------------
def _reference(mha, query, key, value):
    B, Sq, E = query.shape
    H, D = mha.num_heads, mha.head_dim
    scale = math.sqrt(D)
    q = (query @ mha.wq + mha.bq).reshape(B, Sq, H, D).transpose(0, 2, 1, 3)
    k = (key @ mha.wk + mha.bk).reshape(B, -1, H, D).transpose(0, 2, 1, 3)
    v = (value @ mha.wv + mha.bv).reshape(B, -1, H, D).transpose(0, 2, 1, 3)
    s = jnp.einsum("bhqd,bhkd->bhqk", q, k) / scale
    p = jax.nn.softmax(s, axis=-1)
    c = jnp.einsum("bhqk,bhkd->bhqd", p, v)
    c = c.transpose(0, 2, 1, 3).reshape(B, Sq, E)
    return c @ mha.wo + mha.bo


if __name__ == "__main__":
    B, S, E, H = 2, 8, 32, 4

    root = jax.random.PRNGKey(0)
    k_params, k_q, k_k, k_v = jax.random.split(root, 4)

    mha = MultiheadAttentionPallas(emb_size=E, num_heads=H, key=k_params)

    query = jax.random.normal(k_q, (B, S, E), jnp.float32)
    key = jax.random.normal(k_k, (B, S, E), jnp.float32)
    value = jax.random.normal(k_v, (B, S, E), jnp.float32)

    # Cross-attention path (separate Q/K/V projections).
    out = jax.block_until_ready(mha(query, key, value))
    ref = _reference(mha, query, key, value)
    assert out.shape == (B, S, E)
    # Tolerance loosened slightly vs exact softmax: pl.reciprocal(approx=True).
    assert jnp.allclose(out, ref, atol=5e-3, rtol=5e-3), "mismatch vs reference"

    # Self-attention path (fused QKV projection).
    out_sa = jax.block_until_ready(mha(query, query, query))
    ref_sa = _reference(mha, query, query, query)
    assert jnp.allclose(out_sa, ref_sa, atol=5e-3, rtol=5e-3), \
        "mismatch vs reference (fused QKV)"

    print("KERNEL_OK")
</pallas_src>

<mosaic_0001>
module attributes {stable_mosaic.version = 11 : i64} {
  func.func @_linear_kernel(%arg0: i32, %arg1: i32, %arg2: i32, %arg3: memref<16x32xf32, #tpu.memory_space<vmem>>, %arg4: memref<32x32xf32, #tpu.memory_space<vmem>>, %arg5: memref<1x32xf32, #tpu.memory_space<vmem>>, %arg6: memref<16x32xf32, #tpu.memory_space<vmem>>, %arg7: memref<16x32xf32, #tpu.memory_space<vmem>>) attributes {dimension_semantics = [#tpu.dimension_semantics<parallel>, #tpu.dimension_semantics<parallel>, #tpu.dimension_semantics<arbitrary>], iteration_bounds = array<i64: 1, 1, 1>, scalar_prefetch = 0 : i64, scratch_operands = 1 : i64, tpu.core_type = #tpu.core_type<tc>, window_params = [{transform_indices = @transform_0, window_bounds = array<i64: 16, 32>}, {transform_indices = @transform_1, window_bounds = array<i64: 32, 32>}, {transform_indices = @transform_2, window_bounds = array<i64: 1, 32>}, {transform_indices = @transform_3, window_bounds = array<i64: 16, 32>}]} {
    %c0_i32 = arith.constant 0 : i32
    %0 = arith.cmpi eq, %arg2, %c0_i32 : i32
    %1 = arith.extui %0 : i1 to i32
    %c0_i32_0 = arith.constant 0 : i32
    %2 = arith.cmpi ne, %1, %c0_i32_0 : i32
    scf.if %2 {
      %cst_10 = arith.constant 0.000000e+00 : f32
      %12 = vector.broadcast %cst_10 : f32 to vector<16x32xf32>
      %c0_11 = arith.constant 0 : index
      %c0_12 = arith.constant 0 : index
      %13 = vector.load %arg7[%c0_11, %c0_12] : memref<16x32xf32, #tpu.memory_space<vmem>>, vector<16x32xf32>
      tpu.vector_store %arg7[%c0_11, %c0_12], %12 {strides = array<i32>} : memref<16x32xf32, #tpu.memory_space<vmem>>, vector<16x32xf32>,
    } else {
    }
    %c0 = arith.constant 0 : index
    %c0_1 = arith.constant 0 : index
    %3 = vector.load %arg7[%c0, %c0_1] : memref<16x32xf32, #tpu.memory_space<vmem>>, vector<16x32xf32>
    %c0_2 = arith.constant 0 : index
    %c0_3 = arith.constant 0 : index
    %4 = vector.load %arg3[%c0_2, %c0_3] : memref<16x32xf32, #tpu.memory_space<vmem>>, vector<16x32xf32>
    %c0_4 = arith.constant 0 : index
    %c0_5 = arith.constant 0 : index
    %5 = vector.load %arg4[%c0_4, %c0_5] : memref<32x32xf32, #tpu.memory_space<vmem>>, vector<32x32xf32>
    %cst = arith.constant dense<0.000000e+00> : vector<16x32xf32>
    %6 = tpu.matmul %4, %5, %cst {dimension_numbers = #tpu.dot_dimension_numbers<[1], [0], [0], [1], [0, 0, 1, 1], [], []>} : vector<16x32xf32>, vector<32x32xf32>, vector<16x32xf32> -> vector<16x32xf32>
    %7 = arith.addf %3, %6 : vector<16x32xf32>
    %c0_6 = arith.constant 0 : index
    %c0_7 = arith.constant 0 : index
    %8 = vector.load %arg7[%c0_6, %c0_7] : memref<16x32xf32, #tpu.memory_space<vmem>>, vector<16x32xf32>
    tpu.vector_store %arg7[%c0_6, %c0_7], %7 {strides = array<i32>} : memref<16x32xf32, #tpu.memory_space<vmem>>, vector<16x32xf32>,
    %c0_i32_8 = arith.constant 0 : i32
    %9 = arith.cmpi eq, %arg2, %c0_i32_8 : i32
    %10 = arith.extui %9 : i1 to i32
    %c0_i32_9 = arith.constant 0 : i32
    %11 = arith.cmpi ne, %10, %c0_i32_9 : i32
    scf.if %11 {
      %c0_10 = arith.constant 0 : index
      %c0_11 = arith.constant 0 : index
      %12 = vector.load %arg7[%c0_10, %c0_11] : memref<16x32xf32, #tpu.memory_space<vmem>>, vector<16x32xf32>
      %c0_12 = arith.constant 0 : index
      %c0_13 = arith.constant 0 : index
      %13 = vector.load %arg5[%c0_12, %c0_13] : memref<1x32xf32, #tpu.memory_space<vmem>>, vector<1x32xf32>
      %14 = vector.broadcast %13 : vector<1x32xf32> to vector<16x32xf32>
      %15 = arith.addf %12, %14 : vector<16x32xf32>
      %c0_14 = arith.constant 0 : index
      %c0_15 = arith.constant 0 : index
      %16 = vector.load %arg6[%c0_14, %c0_15] : memref<16x32xf32, #tpu.memory_space<vmem>>, vector<16x32xf32>
      tpu.vector_store %arg6[%c0_14, %c0_15], %15 {strides = array<i32>} : memref<16x32xf32, #tpu.memory_space<vmem>>, vector<16x32xf32>,
    } else {
    }
    return
  }
  func.func @transform_0(%arg0: i32, %arg1: i32, %arg2: i32) -> (i32, i32) {
    %c0_i32 = arith.constant 0 : i32
    return %arg0, %arg2 : i32, i32
  }
  func.func @transform_1(%arg0: i32, %arg1: i32, %arg2: i32) -> (i32, i32) {
    %c0_i32 = arith.constant 0 : i32
    return %arg2, %arg1 : i32, i32
  }
  func.func @transform_2(%arg0: i32, %arg1: i32, %arg2: i32) -> (i32, i32) {
    %c0_i32 = arith.constant 0 : i32
    %c0_i32_0 = arith.constant 0 : i32
    return %c0_i32, %arg1 : i32, i32
  }
  func.func @transform_3(%arg0: i32, %arg1: i32, %arg2: i32) -> (i32, i32) {
    %c0_i32 = arith.constant 0 : i32
    return %arg0, %arg1 : i32, i32
  }
}

</mosaic_0001>

<llo_original>
// kernel: tpu_custom_call.1
$region0: #{tpu_custom_call.1}
  #allocation0 [shape = 'u32[]', space=smem, size = 0x4, offset = 0x4, fixed_abs, tag = 'smem constant byte address 0x4 - core index']
  #allocation1 [shape = 'u32[144,128]{1,0:T(1,128)}', space=vmem, size = 0x12000, scoped, tag = 'internal scratch']
  #allocation2 [shape = 'f32[16,32]{1,0:T(8,128)}', space=vmem, size = 0x2000, scoped, tag = 'scratch operand']
  %s0 = inlined_call_operand.hbm [shape: f32[16,32], index: 0, kind: input, shape index: {}]
  %s1 = inlined_call_operand.hbm [shape: f32[32,32], index: 1, kind: input, shape index: {}]
  %s2 = inlined_call_operand.vmem [shape: f32[1,32], index: 2, kind: input, shape index: {}]
  %s3 = inlined_call_operand.hbm [shape: f32[16,32], index: 3, kind: output, shape index: {}]
  %s4 = sld [smem:[#allocation0]]
  $region38: #{tpu_custom_call.1} parent=0
    _
  %s6 = ssub.s32 1, %s4
  %s7 = scalar_select 0, %s6, %s4
  $region1: #{tpu_custom_call.1} parent=0
    #allocation3 [shape = 'u8[8192]{0}', space=vmem, size = 0x2000, scoped, tag = 'input window, operand 0, single buffered']
    #allocation4 [shape = 's32[1]{0}', space=sflag, size = 0x4, scoped, tag = 'scoped memory for tpu_custom_call.1']
    #allocation5 [shape = 's32[1]{0}', space=sflag, size = 0x4, scoped, tag = 'scoped memory for tpu_custom_call.1']
    #allocation6 [shape = 'u8[16384]{0}', space=vmem, size = 0x4000, scoped, tag = 'input window, operand 1, single buffered']
    #allocation7 [shape = 's32[1]{0}', space=sflag, size = 0x4, scoped, tag = 'scoped memory for tpu_custom_call.1']
    #allocation8 [shape = 'u8[8192]{0}', space=vmem, size = 0x2000, scoped, tag = 'output window, operand 0, single buffered']
    %8 = vsyncpa [#allocation4], 0
    %9 = vsyncpa [#allocation7], 0
    %10 = vsyncpa [#allocation5], 0
    // Predicated region
    $region2: #{tpu_custom_call.1} parent=1 // pred_check
      _
    $region3: #{tpu_custom_call.1} parent=1 // pred_check_branch
      %12 = sbr.rel (0) target = $region5
    $region4: #{tpu_custom_call.1} parent=1 // pred_region
      %s14 = ssub.s32 256, 256
      %15 = vsyncadd [#allocation4], %s14
      %s16 = sshll.u32 [#allocation3], 4
      %s17 = int_to_ptr.vmem [resolvable:$true] %s16
      %22 = dma.hbm_to_vmem [thread:$0]  %s0, 256, %s17, [#allocation4], 128, 128, 8
    $region5: #{tpu_custom_call.1} parent=1 // pred_fallthru
      _
    // Predicated region
    $region6: #{tpu_custom_call.1} parent=1 // pred_check
      _
    $region7: #{tpu_custom_call.1} parent=1 // pred_check_branch
      %24 = sbr.rel (0) target = $region9
    $region8: #{tpu_custom_call.1} parent=1 // pred_region
      %s26 = ssub.s32 512, 512
      %27 = vsyncadd [#allocation7], %s26
      %s28 = sshll.u32 [#allocation6], 4
      %s29 = int_to_ptr.vmem [resolvable:$true] %s28
      %34 = dma.hbm_to_vmem [thread:$0]  %s1, 512, %s29, [#allocation7], 128, 128, 8
    $region9: #{tpu_custom_call.1} parent=1 // pred_fallthru
      _
    // Predicated region
    $region10: #{tpu_custom_call.1} parent=1 // pred_check
      _
    $region11: #{tpu_custom_call.1} parent=1 // pred_check_branch
      %36 = sbr.rel (0) target = $region13
    $region12: #{tpu_custom_call.1} parent=1 // pred_region
      _
    $region13: #{tpu_custom_call.1} parent=1 // pred_fallthru
      _
    // Predicated region
    $region14: #{tpu_custom_call.1} parent=1 // pred_check
      _
    $region15: #{tpu_custom_call.1} parent=1 // pred_check_branch
      %38 = sbr.rel (0) target = $region17
    $region16: #{tpu_custom_call.1} parent=1 // pred_region
      %39 = dma.done [#allocation4], 256
    $region17: #{tpu_custom_call.1} parent=1 // pred_fallthru
      _
    // Predicated region
    $region18: #{tpu_custom_call.1} parent=1 // pred_check
      _
    $region19: #{tpu_custom_call.1} parent=1 // pred_check_branch
      %41 = sbr.rel (0) target = $region21
    $region20: #{tpu_custom_call.1} parent=1 // pred_region
      %42 = dma.done [#allocation7], 512
    $region21: #{tpu_custom_call.1} parent=1 // pred_fallthru
      _
    %p43 = scmp.eq.s32.totalorder 0, 0
    // Predicated region
    $region22: #{tpu_custom_call.1} parent=1 // pred_check
      %p44 = pneg %p43
    $region23: #{tpu_custom_call.1} parent=1 // pred_check_branch
      %46 = sbr.rel (%p44) target = $region25
    $region24: #{tpu_custom_call.1} parent=1 // pred_region
      %vm47 = vcmask 261120
      %48 = vst.msk [vmem:[#allocation2] sm:$0xff] %vm47, 0.0
      %49 = vst.msk [vmem:[#allocation2 + $0x8] sm:$0xff] %vm47, 0.0
    $region25: #{tpu_custom_call.1} parent=1 // pred_fallthru
      _
    %v50 = vld [vmem:[#allocation2] sm:$0xff]
    %v51 = vld [vmem:[#allocation2 + $0x8] sm:$0xff]
    %v52 = vld [vmem:[#allocation3] sm:$0xff]
    %v53 = vld [vmem:[#allocation3 + $0x8] sm:$0xff]
    %v54 = vld [vmem:[#allocation6] sm:$0xff]
    %v55 = vld [vmem:[#allocation6 + $0x8] sm:$0xff]
    %v56 = vld [vmem:[#allocation6 + $0x10] sm:$0xff]
    %v57 = vld [vmem:[#allocation6 + $0x18] sm:$0xff]
    %vm58 = vcmask 261120
    %v60 = vsel %vm58, %v52, 0
    %v63 = vsel %vm58, %v53, 0
    %65 = vmatprep.subr.mxu0 0.0
    %66 = vmatpush1.msra.mxu0 %v54
    %67 = vmatprep.subr.mxu0 0.0
    %68 = vmatpush1.msra.mxu0 %v55
    %69 = vmatprep.subr.mxu0 0.0
    %70 = vmatpush1.msra.mxu0 %v56
    %71 = vmatprep.subr.mxu0 0.0
    %72 = vmatpush1.msra.mxu0 %v57
    %73 = vmatprep.subr.mxu0 0.0
    %74 = vmatpush1.msra.mxu0 0.0
    %75 = vmatprep.subr.mxu0 0.0
    %76 = vmatpush1.msra.mxu0 0.0
    %77 = vmatprep.subr.mxu0 0.0
    %78 = vmatpush1.msra.mxu0 0.0
    %79 = vmatprep.subr.mxu0 0.0
    %80 = vmatpush1.msra.mxu0 0.0
    %81 = vmatprep.subr.mxu0 0.0
    %82 = vmatpush1.msra.mxu0 0.0
    %83 = vmatprep.subr.mxu0 0.0
    %84 = vmatpush1.msra.mxu0 0.0
    %85 = vmatprep.subr.mxu0 0.0
    %86 = vmatpush1.msra.mxu0 0.0
    %87 = vmatprep.subr.mxu0 0.0
    %88 = vmatpush1.msra.mxu0 0.0
    %89 = vmatprep.subr.mxu0 0.0
    %90 = vmatpush1.msra.mxu0 0.0
    %91 = vmatprep.subr.mxu0 0.0
    %92 = vmatpush1.msra.mxu0 0.0
    %93 = vmatprep.subr.mxu0 0.0
    %94 = vmatpush1.msra.mxu0 0.0
    %95 = vmatprep.subr.mxu0 0.0
    %96 = vmatpush1.msra.mxu0 0.0
    %97 = vmatprep.subr.mxu0 0.0
    %98 = vmatpush1.msra.mxu0 0.0
    %99 = vmatprep.subr.mxu0 0.0
    %100 = vmatpush1.msra.mxu0 0.0
    %101 = vmatprep.subr.mxu0 0.0
    %102 = vmatpush1.msra.mxu0 0.0
    %103 = vmatprep.subr.mxu0 0.0
    %104 = vmatpush1.msra.mxu0 0.0
    %105 = vmatprep.subr.mxu0 0.0
    %106 = vmatpush1.msra.mxu0 0.0
    %107 = vmatprep.subr.mxu0 0.0
    %108 = vmatpush1.msra.mxu0 0.0
    %109 = vmatprep.subr.mxu0 0.0
    %110 = vmatpush1.msra.mxu0 0.0
    %111 = vmatprep.subr.mxu0 0.0
    %112 = vmatpush1.msra.mxu0 0.0
    %113 = vmatprep.subr.mxu0 0.0
    %114 = vmatpush1.msra.mxu0 0.0
    %115 = vmatprep.subr.mxu0 0.0
    %116 = vmatpush1.msra.mxu0 0.0
    %117 = vmatprep.subr.mxu0 0.0
    %118 = vmatpush1.msra.mxu0 0.0
    %119 = vmatprep.subr.mxu0 0.0
    %120 = vmatpush1.msra.mxu0 0.0
    %121 = vmatprep.subr.mxu0 0.0
    %122 = vmatpush1.msra.mxu0 0.0
    %123 = vmatprep.subr.mxu0 0.0
    %124 = vmatpush1.msra.mxu0 0.0
    %125 = vmatprep.subr.mxu0 0.0
    %126 = vmatpush1.msra.mxu0 0.0
    %127 = vmatprep.subr.mxu0 0.0
    %128 = vmatpush1.msra.mxu0 0.0
    %129 = vmatprep.mubr.f32.mxu0 0.0
    %130 = vmatmul.mubr.f32.gmra.mrb[0].mxu0 %v60
    %v131 = vpop.f32.mrb[0].mxu0
    %v132 = vadd.f32 0.0, %v131
    %v133 = vpop.f32.mrb[0].mxu0
    %134 = vmatprep.mubr.f32.mxu0 0.0
    %135 = vmatmul.mubr.f32.gmra.mrb[0].mxu0 %v63
    %v136 = vpop.f32.mrb[0].mxu0
    %v137 = vadd.f32 0.0, %v136
    %v138 = vpop.f32.mrb[0].mxu0
    %139 = vdwg.mxu0
    %v140 = vadd.f32 %v50, %v132
    %v141 = vadd.f32 %v51, %v137
    %142 = vst.msk [vmem:[#allocation2] sm:$0xff] %vm58, %v140
    %143 = vst.msk [vmem:[#allocation2 + $0x8] sm:$0xff] %vm58, %v141
    // Predicated region
    $region26: #{tpu_custom_call.1} parent=1 // pred_check
      %p144 = pneg %p43
    $region27: #{tpu_custom_call.1} parent=1 // pred_check_branch
      %146 = sbr.rel (%p144) target = $region29
    $region28: #{tpu_custom_call.1} parent=1 // pred_region
      %v147 = vld [vmem:[#allocation2] sm:$0xff]
      %v148 = vld [vmem:[#allocation2 + $0x8] sm:$0xff]
      %v149 = vld [vmem:[%s2] sm:$0x1]
      %v151 = vlaneseq
      %v152 = vshrl.u32 %v151, 7
      %v153 = vsub.s32 0, %v152
      %v154 = vrot.slane %v149, %v153
      %v156 = vadd.f32 %v147, %v154
      %v157 = vadd.f32 %v148, %v154
      %158 = vst.msk [vmem:[#allocation8] sm:$0xff] %vm58, %v156
      %159 = vst.msk [vmem:[#allocation8 + $0x8] sm:$0xff] %vm58, %v157
    $region29: #{tpu_custom_call.1} parent=1 // pred_fallthru
      _
    // Predicated region
    $region30: #{tpu_custom_call.1} parent=1 // pred_check
      _
    $region31: #{tpu_custom_call.1} parent=1 // pred_check_branch
      %161 = sbr.rel (0) target = $region33
    $region32: #{tpu_custom_call.1} parent=1 // pred_region
      %s163 = ssub.s32 256, 256
      %164 = vsyncadd [#allocation5], %s163
      %s165 = sshll.u32 [#allocation8], 4
      %s166 = int_to_ptr.vmem [resolvable:$true] %s165
      %171 = dma.vmem_to_hbm [thread:$0]  %s166, 256, %s3, [#allocation5], 128, 128, 8
    $region33: #{tpu_custom_call.1} parent=1 // pred_fallthru
      _
    // Predicated region
    $region34: #{tpu_custom_call.1} parent=1 // pred_check
      _
    $region35: #{tpu_custom_call.1} parent=1 // pred_check_branch
      %173 = sbr.rel (0) target = $region37
    $region36: #{tpu_custom_call.1} parent=1 // pred_region
      %174 = dma.done [#allocation5], 256
    $region37: #{tpu_custom_call.1} parent=1 // pred_fallthru
      _
    %175 = vsyncpa [#allocation4], 1
    %176 = vsyncpa [#allocation7], 1
    %177 = vsyncpa [#allocation5], 1

</llo_original>
